<compile_context>
chip_gen: v5e
topology: v5e:2x2
jax: 0.10.0
libtpu: 0.0.40
codegen_flags: <defaults>
</compile_context>

<pallas_src>
import functools

import jax
import jax.numpy as jnp
from jax.experimental import pallas as pl
from jax.experimental.pallas import tpu as pltpu


def _round_up(x, m):
    return (x + m - 1) // m * m


def _pick_tile_c(C, HW, target_k=8192):
    """Largest channel tile that divides C, satisfies the (8,128) sublane rule
    (tile_c % 8 == 0 or tile_c == C), and keeps tile_c*HW near target_k."""
    want = max(1, target_k // max(HW, 1))
    for tc in range(min(C, want), 0, -1):
        if C % tc == 0 and (tc % 8 == 0 or tc == C):
            return tc
    return C


# ---------------------------------------------------------------------------
# Pallas kernel: in-kernel global-average-pool + FC (dropout = identity, eval)
# ---------------------------------------------------------------------------
def head_kernel(f_ref, w_ref, b_ref, o_ref, *, inv_hw):
    # f_ref : [TB, TC, HW]  f32  featuremap block (batch tile x channel tile)
    # w_ref : [TC, N_pad]   f32  fc weight slice (fc_weight.T, class-padded)
    # b_ref : [1,  N_pad]   f32  fc bias (class-padded)
    # o_ref : [TB, N_pad]   f32  logits; VMEM-resident across the channel axis
    k = pl.program_id(1)

    @pl.when(k == 0)
    def _():
        # Initialize the resident output tile with the broadcast bias.
        o_ref[...] = jnp.broadcast_to(b_ref[...], o_ref.shape)

    # Global average pool fused in-kernel: sum over HW (XLU), one f32 scale.
    pooled = jnp.sum(f_ref[...], axis=-1) * inv_hw            # [TB, TC] f32

    # nn.Dropout(0.2): identity at inference time.
    # TODO(synk): training-mode dropout would need pltpu.prng_seed/random_bits.

    # Tiny MXU matmul against the original (unreplicated) fc weight slice,
    # accumulated directly into the output block.
    o_ref[...] += jnp.dot(pooled, w_ref[...],
                          preferred_element_type=jnp.float32)


def binary_classifier_head(featuremap_nchw, fc_weight, fc_bias, *,
                           max_tile_b=128, target_k=8192):
    """featuremap_nchw: [B, C, H, W] f32; fc_weight: [num_classes, C] (torch
    layout); fc_bias: [num_classes].  Returns logits [B, num_classes] (f32)."""
    B, C, H, W = featuremap_nchw.shape
    HW = H * W
    num_classes = fc_weight.shape[0]

    N_pad = _round_up(num_classes, 128)           # lane-dense output slab
    tile_b = min(_round_up(B, 8), max_tile_b)     # sublane-aligned batch tile
    B_pad = _round_up(B, tile_b)
    tile_c = _pick_tile_c(C, HW, target_k)        # channel tile (divides C)

    # Free view: NCHW -> [B, C, HW]; only a small batch pad may materialize.
    f = featuremap_nchw.reshape(B, C, HW)
    if B_pad != B:
        f = jnp.pad(f, ((0, B_pad - B), (0, 0), (0, 0)))

    # Original fc weight (tiny, NOT HW-replicated), transposed to [C, N_pad].
    w = jnp.pad(fc_weight.T.astype(jnp.float32),
                ((0, 0), (0, N_pad - num_classes)))
    b = jnp.pad(fc_bias.astype(jnp.float32),
                (0, N_pad - num_classes)).reshape(1, N_pad)

    grid = (B_pad // tile_b, C // tile_c)

    # VMEM budget: double-buffered blocks + headroom (never the full 64 MiB of
    # a v7x TensorCore).
    block_bytes = (tile_b * tile_c * HW * 4       # featuremap block
                   + tile_c * N_pad * 4           # weight slice
                   + N_pad * 4                    # bias
                   + tile_b * N_pad * 4)          # output block
    vmem_limit = int(min(max(2 * block_bytes + (2 << 20), 4 << 20), 32 << 20))

    cost = pl.CostEstimate(
        flops=B_pad * C * HW + 2 * B_pad * C * N_pad,   # pool adds + matmul
        transcendentals=0,
        bytes_accessed=(f.size * 4 + w.size * 4 + b.size * 4
                        + B_pad * N_pad * 4),
    )

    out_padded = pl.pallas_call(
        functools.partial(head_kernel, inv_hw=1.0 / HW),
        out_shape=jax.ShapeDtypeStruct((B_pad, N_pad), jnp.float32),
        grid_spec=pltpu.PrefetchScalarGridSpec(
            num_scalar_prefetch=0,
            grid=grid,
            in_specs=[
                pl.BlockSpec((tile_b, tile_c, HW), lambda i, k: (i, k, 0)),
                pl.BlockSpec((tile_c, N_pad), lambda i, k: (k, 0)),
                pl.BlockSpec((1, N_pad), lambda i, k: (0, 0)),
            ],
            out_specs=pl.BlockSpec((tile_b, N_pad), lambda i, k: (i, 0)),
        ),
        compiler_params=pltpu.CompilerParams(
            # At small batch grid[0]==1, so megacore sharding buys nothing on
            # v7x (second TC idles); acceptable for this inference head.
            dimension_semantics=("parallel", "arbitrary"),
            vmem_limit_bytes=vmem_limit,
        ),
        cost_estimate=cost,
    )(f, w, b)

    return out_padded[:B, :num_classes]


# ---------------------------------------------------------------------------
# Glue: deterministic synthetic encoder stand-in + parameter setup
# ---------------------------------------------------------------------------
def synthetic_encoder(x_nchw, enc_w, enc_b):
    """Stand-in for self.encoder.forward_features (MODEL_DICTS is empty in the
    source, so the real backbone cannot be instantiated).
    1x1 pointwise conv + ReLU:  [B, Cin, H, W] -> [B, num_features, H, W]."""
    # TODO(synk): real DCL backbone (EfficientNet/Xception) not reproducible;
    # at production shapes its tail should be fused with this head kernel to
    # avoid the featuremap HBM round-trip.
    feat = jnp.einsum('bchw,oc->bohw', x_nchw, enc_w) + enc_b[None, :, None, None]
    return jnp.maximum(feat, 0.0)


if __name__ == "__main__":
    key = jax.random.PRNGKey(0)
    kx, kw0, kb0, kw1, kb1 = jax.random.split(key, 5)

    # Small, module-consistent shapes.
    B, C_IN, H, W = 2, 4, 16, 16
    NUM_FEATURES = 32          # encoder.last_channel stand-in
    NUM_CLASSES = 2
    # (feature_squeeze / feature_squeeze2 convs are defined in __init__ but
    #  never used in forward(), so they are not implemented.)

    x = jax.random.normal(kx, (B, C_IN, H, W), dtype=jnp.float32)

    enc_w = 0.1 * jax.random.normal(kw0, (NUM_FEATURES, C_IN), dtype=jnp.float32)
    enc_b = 0.1 * jax.random.normal(kb0, (NUM_FEATURES,), dtype=jnp.float32)

    fc_w = 0.1 * jax.random.normal(kw1, (NUM_CLASSES, NUM_FEATURES), dtype=jnp.float32)
    fc_b = 0.1 * jax.random.normal(kb1, (NUM_CLASSES,), dtype=jnp.float32)

    featuremap = synthetic_encoder(x, enc_w, enc_b)     # [B, 32, 16, 16]

    logits = binary_classifier_head(featuremap, fc_w, fc_b)
    logits = jax.block_until_ready(logits)

    # Pure-JAX f32 reference for the head (pool -> dropout(eval) -> fc).
    pooled_ref = jnp.mean(featuremap, axis=(2, 3))
    logits_ref = (jnp.dot(pooled_ref, fc_w.T,
                          precision=jax.lax.Precision.HIGHEST) + fc_b)

    assert logits.shape == (B, NUM_CLASSES)
    # All-f32 pipeline (pool summed in f32, original unscaled f32 weight);
    # only MXU matmul rounding separates kernel from reference.
    assert jnp.allclose(logits, logits_ref, atol=2e-3, rtol=1e-3), (
        jnp.max(jnp.abs(logits - logits_ref)))

    print("KERNEL_OK")
</pallas_src>

<mosaic_0001>
module attributes {stable_mosaic.version = 11 : i64} {
  func.func @head_kernel(%arg0: i32, %arg1: i32, %arg2: memref<8x32x256xf32, #tpu.memory_space<vmem>>, %arg3: memref<32x128xf32, #tpu.memory_space<vmem>>, %arg4: memref<1x128xf32, #tpu.memory_space<vmem>>, %arg5: memref<8x128xf32, #tpu.memory_space<vmem>>) attributes {dimension_semantics = [#tpu.dimension_semantics<parallel>, #tpu.dimension_semantics<arbitrary>], iteration_bounds = array<i64: 1, 1>, scalar_prefetch = 0 : i64, scratch_operands = 0 : i64, tpu.core_type = #tpu.core_type<tc>, window_params = [{transform_indices = @transform_0, window_bounds = array<i64: 8, 32, 256>}, {transform_indices = @transform_1, window_bounds = array<i64: 32, 128>}, {pipeline_mode = #tpu.pipeline_mode<synchronous>, transform_indices = @transform_2, window_bounds = array<i64: 1, 128>}, {transform_indices = @transform_3, window_bounds = array<i64: 8, 128>}]} {
    %c0_i32 = arith.constant 0 : i32
    %0 = arith.cmpi eq, %arg1, %c0_i32 : i32
    %1 = arith.extui %0 : i1 to i32
    %c0_i32_0 = arith.constant 0 : i32
    %2 = arith.cmpi ne, %1, %c0_i32_0 : i32
    scf.if %2 {
      %c0_11 = arith.constant 0 : index
      %c0_12 = arith.constant 0 : index
      %12 = vector.load %arg4[%c0_11, %c0_12] : memref<1x128xf32, #tpu.memory_space<vmem>>, vector<1x128xf32>
      %13 = vector.shape_cast %12 : vector<1x128xf32> to vector<1x128xf32>
      %14 = vector.broadcast %13 : vector<1x128xf32> to vector<8x128xf32>
      %c0_13 = arith.constant 0 : index
      %c0_14 = arith.constant 0 : index
      %15 = vector.load %arg5[%c0_13, %c0_14] : memref<8x128xf32, #tpu.memory_space<vmem>>, vector<8x128xf32>
      tpu.vector_store %arg5[%c0_13, %c0_14], %14 {strides = array<i32>} : memref<8x128xf32, #tpu.memory_space<vmem>>, vector<8x128xf32>,
    } else {
    }
    %c0 = arith.constant 0 : index
    %c0_1 = arith.constant 0 : index
    %c0_2 = arith.constant 0 : index
    %3 = vector.load %arg2[%c0, %c0_1, %c0_2] : memref<8x32x256xf32, #tpu.memory_space<vmem>>, vector<8x32x256xf32>
    %cst = arith.constant dense<0.000000e+00> : vector<8x32xf32>
    %4 = vector.multi_reduction <add>, %3, %cst [2] : vector<8x32x256xf32> to vector<8x32xf32>
    %cst_3 = arith.constant 3.906250e-03 : f32
    %5 = vector.broadcast %cst_3 : f32 to vector<8x32xf32>
    %6 = arith.mulf %4, %5 : vector<8x32xf32>
    %c0_4 = arith.constant 0 : index
    %c0_5 = arith.constant 0 : index
    %7 = vector.load %arg5[%c0_4, %c0_5] : memref<8x128xf32, #tpu.memory_space<vmem>>, vector<8x128xf32>
    %c0_6 = arith.constant 0 : index
    %c0_7 = arith.constant 0 : index
    %8 = vector.load %arg3[%c0_6, %c0_7] : memref<32x128xf32, #tpu.memory_space<vmem>>, vector<32x128xf32>
    %cst_8 = arith.constant dense<0.000000e+00> : vector<8x128xf32>
    %9 = tpu.matmul %6, %8, %cst_8 {dimension_numbers = #tpu.dot_dimension_numbers<[1], [0], [0], [1], [0, 0, 1, 1], [], []>} : vector<8x32xf32>, vector<32x128xf32>, vector<8x128xf32> -> vector<8x128xf32>
    %10 = arith.addf %7, %9 : vector<8x128xf32>
    %c0_9 = arith.constant 0 : index
    %c0_10 = arith.constant 0 : index
    %11 = vector.load %arg5[%c0_9, %c0_10] : memref<8x128xf32, #tpu.memory_space<vmem>>, vector<8x128xf32>
    tpu.vector_store %arg5[%c0_9, %c0_10], %10 {strides = array<i32>} : memref<8x128xf32, #tpu.memory_space<vmem>>, vector<8x128xf32>,
    return
  }
  func.func @transform_0(%arg0: i32, %arg1: i32) -> (i32, i32, i32) {
    %c0_i32 = arith.constant 0 : i32
    %c0_i32_0 = arith.constant 0 : i32
    return %arg0, %arg1, %c0_i32 : i32, i32, i32
  }
  func.func @transform_1(%arg0: i32, %arg1: i32) -> (i32, i32) {
    %c0_i32 = arith.constant 0 : i32
    %c0_i32_0 = arith.constant 0 : i32
    return %arg1, %c0_i32 : i32, i32
  }
  func.func @transform_2(%arg0: i32, %arg1: i32) -> (i32, i32) {
    %c0_i32 = arith.constant 0 : i32
    %c0_i32_0 = arith.constant 0 : i32
    %c0_i32_1 = arith.constant 0 : i32
    return %c0_i32, %c0_i32_0 : i32, i32
  }
  func.func @transform_3(%arg0: i32, %arg1: i32) -> (i32, i32) {
    %c0_i32 = arith.constant 0 : i32
    %c0_i32_0 = arith.constant 0 : i32
    return %arg0, %c0_i32 : i32, i32
  }
}

</mosaic_0001>

<llo_original>
// kernel: tpu_custom_call.1
$region0: #{tpu_custom_call.1}
  #allocation0 [shape = 'u32[]', space=smem, size = 0x4, offset = 0x4, fixed_abs, tag = 'smem constant byte address 0x4 - core index']
  #allocation1 [shape = 'u32[72,128]{1,0:T(1,128)}', space=vmem, size = 0x9000, scoped, tag = 'internal scratch']
  %s0 = inlined_call_operand.hbm [shape: f32[8,32,256], index: 0, kind: input, shape index: {}]
  %s1 = inlined_call_operand.hbm [shape: f32[32,128], index: 1, kind: input, shape index: {}]
  %s2 = inlined_call_operand.vmem [shape: f32[1,128], index: 2, kind: input, shape index: {}]
  %s3 = inlined_call_operand.hbm [shape: f32[8,128], index: 3, kind: output, shape index: {}]
  %s4 = sld [smem:[#allocation0]]
  $region34: #{tpu_custom_call.1} parent=0
    _
  %s6 = ssub.s32 1, %s4
  %s7 = scalar_select 0, %s6, %s4
  $region1: #{tpu_custom_call.1} parent=0
    #allocation2 [shape = 'u8[262144]{0}', space=vmem, size = 0x40000, scoped, tag = 'input window, operand 0, single buffered']
    #allocation3 [shape = 's32[1]{0}', space=sflag, size = 0x4, scoped, tag = 'scoped memory for tpu_custom_call.1']
    #allocation4 [shape = 's32[1]{0}', space=sflag, size = 0x4, scoped, tag = 'scoped memory for tpu_custom_call.1']
    #allocation5 [shape = 'u8[16384]{0}', space=vmem, size = 0x4000, scoped, tag = 'input window, operand 1, single buffered']
    #allocation6 [shape = 's32[1]{0}', space=sflag, size = 0x4, scoped, tag = 'scoped memory for tpu_custom_call.1']
    #allocation7 [shape = 'u8[4096]{0}', space=vmem, size = 0x1000, scoped, tag = 'output window, operand 0, single buffered']
    %8 = vsyncpa [#allocation3], 0
    %9 = vsyncpa [#allocation6], 0
    %10 = vsyncpa [#allocation4], 0
    // Predicated region
    $region2: #{tpu_custom_call.1} parent=1 // pred_check
      _
    $region3: #{tpu_custom_call.1} parent=1 // pred_check_branch
      %12 = sbr.rel (0) target = $region5
    $region4: #{tpu_custom_call.1} parent=1 // pred_region
      %14 = vsyncadd [#allocation3], 0
      %s15 = sshll.u32 %s0, 4
      %s16 = int_to_ptr.hbm [resolvable:$true] %s15
      %s17 = sshll.u32 [#allocation2], 4
      %s18 = int_to_ptr.vmem [resolvable:$true] %s17
      %23 = dma.hbm_to_vmem [thread:$0]  %s16, 8192, %s18, [#allocation3], 256, 256, 16
    $region5: #{tpu_custom_call.1} parent=1 // pred_fallthru
      _
    // Predicated region
    $region6: #{tpu_custom_call.1} parent=1 // pred_check
      _
    $region7: #{tpu_custom_call.1} parent=1 // pred_check_branch
      %25 = sbr.rel (0) target = $region9
    $region8: #{tpu_custom_call.1} parent=1 // pred_region
      %27 = vsyncadd [#allocation6], 0
      %s28 = sshll.u32 %s1, 4
      %s29 = int_to_ptr.hbm [resolvable:$true] %s28
      %s30 = sshll.u32 [#allocation5], 4
      %s31 = int_to_ptr.vmem [resolvable:$true] %s30
      %36 = dma.hbm_to_vmem [thread:$0]  %s29, 512, %s31, [#allocation6], 128, 128, 8
    $region9: #{tpu_custom_call.1} parent=1 // pred_fallthru
      _
    // Predicated region
    $region10: #{tpu_custom_call.1} parent=1 // pred_check
      _
    $region11: #{tpu_custom_call.1} parent=1 // pred_check_branch
      %38 = sbr.rel (0) target = $region13
    $region12: #{tpu_custom_call.1} parent=1 // pred_region
      _
    $region13: #{tpu_custom_call.1} parent=1 // pred_fallthru
      _
    // Predicated region
    $region14: #{tpu_custom_call.1} parent=1 // pred_check
      _
    $region15: #{tpu_custom_call.1} parent=1 // pred_check_branch
      %40 = sbr.rel (0) target = $region17
    $region16: #{tpu_custom_call.1} parent=1 // pred_region
      %42 = dma.done [#allocation3], 8192
    $region17: #{tpu_custom_call.1} parent=1 // pred_fallthru
      _
    // Predicated region
    $region18: #{tpu_custom_call.1} parent=1 // pred_check
      _
    $region19: #{tpu_custom_call.1} parent=1 // pred_check_branch
      %44 = sbr.rel (0) target = $region21
    $region20: #{tpu_custom_call.1} parent=1 // pred_region
      %46 = dma.done [#allocation6], 512
    $region21: #{tpu_custom_call.1} parent=1 // pred_fallthru
      _
    %p47 = scmp.eq.s32.totalorder 0, 0
    // Predicated region
    $region22: #{tpu_custom_call.1} parent=1 // pred_check
      %p48 = pneg %p47
    $region23: #{tpu_custom_call.1} parent=1 // pred_check_branch
      %50 = sbr.rel (%p48) target = $region25
    $region24: #{tpu_custom_call.1} parent=1 // pred_region
      %v51 = vld [vmem:[%s2] sm:$0x1]
      %v53 = vperm.slane %v51, 0
      %55 = vst [vmem:[#allocation7] sm:$0xff] %v53
    $region25: #{tpu_custom_call.1} parent=1 // pred_fallthru
      _
    %v56 = vld [vmem:[#allocation2] sm:$0xff]
    %v57 = vld [vmem:[#allocation2 + $0x8] sm:$0xff]
    %v58 = vld [vmem:[#allocation2 + $0x10] sm:$0xff]
    %v59 = vld [vmem:[#allocation2 + $0x18] sm:$0xff]
    %v60 = vld [vmem:[#allocation2 + $0x20] sm:$0xff]
    %v61 = vld [vmem:[#allocation2 + $0x28] sm:$0xff]
    %v62 = vld [vmem:[#allocation2 + $0x30] sm:$0xff]
    %v63 = vld [vmem:[#allocation2 + $0x38] sm:$0xff]
    %v64 = vld [vmem:[#allocation2 + $0x40] sm:$0xff]
    %v65 = vld [vmem:[#allocation2 + $0x48] sm:$0xff]
    %v66 = vld [vmem:[#allocation2 + $0x50] sm:$0xff]
    %v67 = vld [vmem:[#allocation2 + $0x58] sm:$0xff]
    %v68 = vld [vmem:[#allocation2 + $0x60] sm:$0xff]
    %v69 = vld [vmem:[#allocation2 + $0x68] sm:$0xff]
    %v70 = vld [vmem:[#allocation2 + $0x70] sm:$0xff]
    %v71 = vld [vmem:[#allocation2 + $0x78] sm:$0xff]
    %v72 = vld [vmem:[#allocation2 + $0x80] sm:$0xff]
    %v73 = vld [vmem:[#allocation2 + $0x88] sm:$0xff]
    %v74 = vld [vmem:[#allocation2 + $0x90] sm:$0xff]
    %v75 = vld [vmem:[#allocation2 + $0x98] sm:$0xff]
    %v76 = vld [vmem:[#allocation2 + $0xa0] sm:$0xff]
    %v77 = vld [vmem:[#allocation2 + $0xa8] sm:$0xff]
    %v78 = vld [vmem:[#allocation2 + $0xb0] sm:$0xff]
    %v79 = vld [vmem:[#allocation2 + $0xb8] sm:$0xff]
    %v80 = vld [vmem:[#allocation2 + $0xc0] sm:$0xff]
    %v81 = vld [vmem:[#allocation2 + $0xc8] sm:$0xff]
    %v82 = vld [vmem:[#allocation2 + $0xd0] sm:$0xff]
    %v83 = vld [vmem:[#allocation2 + $0xd8] sm:$0xff]
    %v84 = vld [vmem:[#allocation2 + $0xe0] sm:$0xff]
    %v85 = vld [vmem:[#allocation2 + $0xe8] sm:$0xff]
    %v86 = vld [vmem:[#allocation2 + $0xf0] sm:$0xff]
    %v87 = vld [vmem:[#allocation2 + $0xf8] sm:$0xff]
    %v88 = vld [vmem:[#allocation2 + $0x100] sm:$0xff]
    %v89 = vld [vmem:[#allocation2 + $0x108] sm:$0xff]
    %v90 = vld [vmem:[#allocation2 + $0x110] sm:$0xff]
    %v91 = vld [vmem:[#allocation2 + $0x118] sm:$0xff]
    %v92 = vld [vmem:[#allocation2 + $0x120] sm:$0xff]
    %v93 = vld [vmem:[#allocation2 + $0x128] sm:$0xff]
    %v94 = vld [vmem:[#allocation2 + $0x130] sm:$0xff]
    %v95 = vld [vmem:[#allocation2 + $0x138] sm:$0xff]
    %v96 = vld [vmem:[#allocation2 + $0x140] sm:$0xff]
    %v97 = vld [vmem:[#allocation2 + $0x148] sm:$0xff]
    %v98 = vld [vmem:[#allocation2 + $0x150] sm:$0xff]
    %v99 = vld [vmem:[#allocation2 + $0x158] sm:$0xff]
    %v100 = vld [vmem:[#allocation2 + $0x160] sm:$0xff]
    %v101 = vld [vmem:[#allocation2 + $0x168] sm:$0xff]
    %v102 = vld [vmem:[#allocation2 + $0x170] sm:$0xff]
    %v103 = vld [vmem:[#allocation2 + $0x178] sm:$0xff]
    %v104 = vld [vmem:[#allocation2 + $0x180] sm:$0xff]
    %v105 = vld [vmem:[#allocation2 + $0x188] sm:$0xff]
    %v106 = vld [vmem:[#allocation2 + $0x190] sm:$0xff]
    %v107 = vld [vmem:[#allocation2 + $0x198] sm:$0xff]
    %v108 = vld [vmem:[#allocation2 + $0x1a0] sm:$0xff]
    %v109 = vld [vmem:[#allocation2 + $0x1a8] sm:$0xff]
    %v110 = vld [vmem:[#allocation2 + $0x1b0] sm:$0xff]
    %v111 = vld [vmem:[#allocation2 + $0x1b8] sm:$0xff]
    %v112 = vld [vmem:[#allocation2 + $0x1c0] sm:$0xff]
    %v113 = vld [vmem:[#allocation2 + $0x1c8] sm:$0xff]
    %v114 = vld [vmem:[#allocation2 + $0x1d0] sm:$0xff]
    %v115 = vld [vmem:[#allocation2 + $0x1d8] sm:$0xff]
    %v116 = vld [vmem:[#allocation2 + $0x1e0] sm:$0xff]
    %v117 = vld [vmem:[#allocation2 + $0x1e8] sm:$0xff]
    %v118 = vld [vmem:[#allocation2 + $0x1f0] sm:$0xff]
    %v119 = vld [vmem:[#allocation2 + $0x1f8] sm:$0xff]
    %v120 = vadd.f32 %v56, %v57
    %121 = vadd.xlane.f32.xlu0 %v120
    %v122 = vpop.xlane.xlu0 %121
    %v123 = vadd.f32 %v58, %v59
    %124 = vadd.xlane.f32.xlu0 %v123
    %v125 = vpop.xlane.xlu0 %124
    %v126 = vadd.f32 %v60, %v61
    %127 = vadd.xlane.f32.xlu0 %v126
    %v128 = vpop.xlane.xlu0 %127
    %v129 = vadd.f32 %v62, %v63
    %130 = vadd.xlane.f32.xlu0 %v129
    %v131 = vpop.xlane.xlu0 %130
    %v132 = vadd.f32 %v64, %v65
    %133 = vadd.xlane.f32.xlu0 %v132
    %v134 = vpop.xlane.xlu0 %133
    %v135 = vadd.f32 %v66, %v67
    %136 = vadd.xlane.f32.xlu0 %v135
    %v137 = vpop.xlane.xlu0 %136
    %v138 = vadd.f32 %v68, %v69
    %139 = vadd.xlane.f32.xlu0 %v138
    %v140 = vpop.xlane.xlu0 %139
    %v141 = vadd.f32 %v70, %v71
    %142 = vadd.xlane.f32.xlu0 %v141
    %v143 = vpop.xlane.xlu0 %142
    %v144 = vadd.f32 %v72, %v73
    %145 = vadd.xlane.f32.xlu0 %v144
    %v146 = vpop.xlane.xlu0 %145
    %v147 = vadd.f32 %v74, %v75
    %148 = vadd.xlane.f32.xlu0 %v147
    %v149 = vpop.xlane.xlu0 %148
    %v150 = vadd.f32 %v76, %v77
    %151 = vadd.xlane.f32.xlu0 %v150
    %v152 = vpop.xlane.xlu0 %151
    %v153 = vadd.f32 %v78, %v79
    %154 = vadd.xlane.f32.xlu0 %v153
    %v155 = vpop.xlane.xlu0 %154
    %v156 = vadd.f32 %v80, %v81
    %157 = vadd.xlane.f32.xlu0 %v156
    %v158 = vpop.xlane.xlu0 %157
    %v159 = vadd.f32 %v82, %v83
    %160 = vadd.xlane.f32.xlu0 %v159
    %v161 = vpop.xlane.xlu0 %160
    %v162 = vadd.f32 %v84, %v85
    %163 = vadd.xlane.f32.xlu0 %v162
    %v164 = vpop.xlane.xlu0 %163
    %v165 = vadd.f32 %v86, %v87
    %166 = vadd.xlane.f32.xlu0 %v165
    %v167 = vpop.xlane.xlu0 %166
    %v168 = vadd.f32 %v88, %v89
    %169 = vadd.xlane.f32.xlu0 %v168
    %v170 = vpop.xlane.xlu0 %169
    %v171 = vadd.f32 %v90, %v91
    %172 = vadd.xlane.f32.xlu0 %v171
    %v173 = vpop.xlane.xlu0 %172
    %v174 = vadd.f32 %v92, %v93
    %175 = vadd.xlane.f32.xlu0 %v174
    %v176 = vpop.xlane.xlu0 %175
    %v177 = vadd.f32 %v94, %v95
    %178 = vadd.xlane.f32.xlu0 %v177
    %v179 = vpop.xlane.xlu0 %178
    %v180 = vadd.f32 %v96, %v97
    %181 = vadd.xlane.f32.xlu0 %v180
    %v182 = vpop.xlane.xlu0 %181
    %v183 = vadd.f32 %v98, %v99
    %184 = vadd.xlane.f32.xlu0 %v183
    %v185 = vpop.xlane.xlu0 %184
    %v186 = vadd.f32 %v100, %v101
    %187 = vadd.xlane.f32.xlu0 %v186
    %v188 = vpop.xlane.xlu0 %187
    %v189 = vadd.f32 %v102, %v103
    %190 = vadd.xlane.f32.xlu0 %v189
    %v191 = vpop.xlane.xlu0 %190
    %v192 = vadd.f32 %v104, %v105
    %193 = vadd.xlane.f32.xlu0 %v192
    %v194 = vpop.xlane.xlu0 %193
    %v195 = vadd.f32 %v106, %v107
    %196 = vadd.xlane.f32.xlu0 %v195
    %v197 = vpop.xlane.xlu0 %196
    %v198 = vadd.f32 %v108, %v109
    %199 = vadd.xlane.f32.xlu0 %v198
    %v200 = vpop.xlane.xlu0 %199
    %v201 = vadd.f32 %v110, %v111
    %202 = vadd.xlane.f32.xlu0 %v201
    %v203 = vpop.xlane.xlu0 %202
    %v204 = vadd.f32 %v112, %v113
    %205 = vadd.xlane.f32.xlu0 %v204
    %v206 = vpop.xlane.xlu0 %205
    %v207 = vadd.f32 %v114, %v115
    %208 = vadd.xlane.f32.xlu0 %v207
    %v209 = vpop.xlane.xlu0 %208
    %v210 = vadd.f32 %v116, %v117
    %211 = vadd.xlane.f32.xlu0 %v210
    %v212 = vpop.xlane.xlu0 %211
    %v213 = vadd.f32 %v118, %v119
    %214 = vadd.xlane.f32.xlu0 %v213
    %v215 = vpop.xlane.xlu0 %214
    %v216 = vmul.f32 %v122, 0.00390625
    %v217 = vmul.f32 %v125, 0.00390625
    %v218 = vmul.f32 %v128, 0.00390625
    %v219 = vmul.f32 %v131, 0.00390625
    %v220 = vmul.f32 %v134, 0.00390625
    %v221 = vmul.f32 %v137, 0.00390625
    %v222 = vmul.f32 %v140, 0.00390625
    %v223 = vmul.f32 %v143, 0.00390625
    %v224 = vmul.f32 %v146, 0.00390625
    %v225 = vmul.f32 %v149, 0.00390625
    %v226 = vmul.f32 %v152, 0.00390625
    %v227 = vmul.f32 %v155, 0.00390625
    %v228 = vmul.f32 %v158, 0.00390625
    %v229 = vmul.f32 %v161, 0.00390625
    %v230 = vmul.f32 %v164, 0.00390625
    %v231 = vmul.f32 %v167, 0.00390625
    %v232 = vmul.f32 %v170, 0.00390625
    %v233 = vmul.f32 %v173, 0.00390625
    %v234 = vmul.f32 %v176, 0.00390625
    %v235 = vmul.f32 %v179, 0.00390625
    %v236 = vmul.f32 %v182, 0.00390625
    %v237 = vmul.f32 %v185, 0.00390625
    %v238 = vmul.f32 %v188, 0.00390625
    %v239 = vmul.f32 %v191, 0.00390625
    %v240 = vmul.f32 %v194, 0.00390625
    %v241 = vmul.f32 %v197, 0.00390625
    %v242 = vmul.f32 %v200, 0.00390625
    %v243 = vmul.f32 %v203, 0.00390625
    %v244 = vmul.f32 %v206, 0.00390625
    %v245 = vmul.f32 %v209, 0.00390625
    %v246 = vmul.f32 %v212, 0.00390625
    %v247 = vmul.f32 %v215, 0.00390625
    %v248 = vld [vmem:[#allocation7] sm:$0xff]
    %v249 = vld [vmem:[#allocation5] sm:$0xff]
    %v250 = vld [vmem:[#allocation5 + $0x8] sm:$0xff]
    %v251 = vld [vmem:[#allocation5 + $0x10] sm:$0xff]
    %v252 = vld [vmem:[#allocation5 + $0x18] sm:$0xff]
    %v285 = vlaneseq
    %v286 = vand.u32 %v285, 127
    %v287 = vperm.slane %v216, %v286
    %v288 = vadd.s32 %v286, 4294967288
    %v289 = vperm.slane %v217, %v288
    %vm290 = vcmask 130112
    %v291 = vsel %vm290, %v289, %v287
    %v292 = vadd.s32 %v286, 4294967280
    %v293 = vperm.slane %v218, %v292
    %vm294 = vcmask 195712
    %v295 = vsel %vm294, %v293, %v291
    %v296 = vadd.s32 %v286, 4294967272
    %v297 = vperm.slane %v219, %v296
    %vm298 = vcmask 261312
    %v299 = vsel %vm298, %v297, %v295
    %v300 = vperm.slane %v220, %v286
    %v301 = vperm.slane %v221, %v288
    %v302 = vsel %vm290, %v301, %v300
    %v303 = vperm.slane %v222, %v292
    %v304 = vsel %vm294, %v303, %v302
    %v305 = vperm.slane %v223, %v296
    %v306 = vsel %vm298, %v305, %v304
    %v307 = vperm.slane %v224, %v286
    %v308 = vperm.slane %v225, %v288
    %v309 = vsel %vm290, %v308, %v307
    %v310 = vperm.slane %v226, %v292
    %v311 = vsel %vm294, %v310, %v309
    %v312 = vperm.slane %v227, %v296
    %v313 = vsel %vm298, %v312, %v311
    %v314 = vperm.slane %v228, %v286
    %v315 = vperm.slane %v229, %v288
    %v316 = vsel %vm290, %v315, %v314
    %v317 = vperm.slane %v230, %v292
    %v318 = vsel %vm294, %v317, %v316
    %v319 = vperm.slane %v231, %v296
    %v320 = vsel %vm298, %v319, %v318
    %v321 = vperm.slane %v232, %v286
    %v322 = vperm.slane %v233, %v288
    %v323 = vsel %vm290, %v322, %v321
    %v324 = vperm.slane %v234, %v292
    %v325 = vsel %vm294, %v324, %v323
    %v326 = vperm.slane %v235, %v296
    %v327 = vsel %vm298, %v326, %v325
    %v328 = vperm.slane %v236, %v286
    %v329 = vperm.slane %v237, %v288
    %v330 = vsel %vm290, %v329, %v328
    %v331 = vperm.slane %v238, %v292
    %v332 = vsel %vm294, %v331, %v330
    %v333 = vperm.slane %v239, %v296
    %v334 = vsel %vm298, %v333, %v332
    %v335 = vperm.slane %v240, %v286
    %v336 = vperm.slane %v241, %v288
    %v337 = vsel %vm290, %v336, %v335
    %v338 = vperm.slane %v242, %v292
    %v339 = vsel %vm294, %v338, %v337
    %v340 = vperm.slane %v243, %v296
    %v341 = vsel %vm298, %v340, %v339
    %v342 = vperm.slane %v244, %v286
    %v343 = vperm.slane %v245, %v288
    %v344 = vsel %vm290, %v343, %v342
    %v345 = vperm.slane %v246, %v292
    %v346 = vsel %vm294, %v345, %v344
    %v347 = vperm.slane %v247, %v296
    %v348 = vsel %vm298, %v347, %v346
    %vm349 = vcmask 1041409
    %v350 = vsel %vm349, %v306, %v299
    %vm351 = vcmask 1042434
    %v352 = vsel %vm351, %v313, %v350
    %vm353 = vcmask 1043459
    %v354 = vsel %vm353, %v320, %v352
    %vm355 = vcmask 1044484
    %v356 = vsel %vm355, %v327, %v354
    %vm357 = vcmask 1045509
    %v358 = vsel %vm357, %v334, %v356
    %vm359 = vcmask 1046534
    %v360 = vsel %vm359, %v341, %v358
    %vm361 = vcmask 1047559
    %v362 = vsel %vm361, %v348, %v360
    %vm363 = vcmask 261120
    %v364 = vsel %vm363, %v362, 0
    %366 = vmatpush.msra.mxu0 0.0
    %367 = vmatpush.msra.mxu0 0.0
    %368 = vmatpush.msra.mxu0 0.0
    %369 = vmatpush.msra.mxu0 0.0
    %370 = vmatpush.msra.mxu0 0.0
    %371 = vmatpush.msra.mxu0 0.0
    %372 = vmatpush.msra.mxu0 0.0
    %373 = vmatpush.msra.mxu0 0.0
    %374 = vmatpush.msra.mxu0 0.0
    %375 = vmatpush.msra.mxu0 0.0
    %376 = vmatpush.msra.mxu0 0.0
    %377 = vmatpush.msra.mxu0 0.0
    %378 = vmatpush.msra.mxu0 %v252
    %379 = vmatpush.msra.mxu0 %v251
    %380 = vmatpush.msra.mxu0 %v250
    %381 = vmatpush.msra.mxu0 %v249
    %382 = vmatmul.f32.gmra.mxu0 %v364
    %v383 = vpop.f32.mrf.mxu0
    %v384 = vadd.f32 0.0, %v383
    %385 = vdwg.mxu0
    %v386 = vadd.f32 %v248, %v384
    %387 = vst [vmem:[#allocation7] sm:$0xff] %v386
    // Predicated region
    $region26: #{tpu_custom_call.1} parent=1 // pred_check
      _
    $region27: #{tpu_custom_call.1} parent=1 // pred_check_branch
      %389 = sbr.rel (0) target = $region29
    $region28: #{tpu_custom_call.1} parent=1 // pred_region
      %391 = vsyncadd [#allocation4], 0
      %s393 = sshll.u32 [#allocation7], 4
      %s394 = int_to_ptr.vmem [resolvable:$true] %s393
      %s395 = sshll.u32 %s3, 4
      %s396 = int_to_ptr.hbm [resolvable:$true] %s395
      %398 = dma.vmem_to_hbm [thread:$0]  %s394, 128, %s396, [#allocation4]
    $region29: #{tpu_custom_call.1} parent=1 // pred_fallthru
      _
    // Predicated region
    $region30: #{tpu_custom_call.1} parent=1 // pred_check
      _
    $region31: #{tpu_custom_call.1} parent=1 // pred_check_branch
      %400 = sbr.rel (0) target = $region33
    $region32: #{tpu_custom_call.1} parent=1 // pred_region
      %402 = dma.done [#allocation4], 128
    $region33: #{tpu_custom_call.1} parent=1 // pred_fallthru
      _
    %403 = vsyncpa [#allocation3], 1
    %404 = vsyncpa [#allocation6], 1
    %405 = vsyncpa [#allocation4], 1

</llo_original>
